<compile_context>
chip_gen: v7x
topology: tpu7x:2x2x1
jax: 0.10.0
libtpu: 0.0.40
codegen_flags: <defaults>
</compile_context>

<pallas_src>
import math
from functools import partial

import jax
import jax.numpy as jnp
from jax.experimental import pallas as pl
from jax.experimental.pallas import tpu as pltpu


# ---------------------------------------------------------------------------
# Kernel: one batch tile of the fused NegativeBinomial head.
#   h_ref  : (TBp, pack*K)       packed hidden states (pack logical rows / packed row)
#   w_ref  : (pack*K, 2*pack*O)  block-diagonal fused weight [mu heads | alpha heads]
#   b_ref  : (1, 2*pack*O)       fused bias row
#   mu_ref : (TBp, pack*O)       softplus(mu_linear), packed
#   a_ref  : (TBp, pack*O)       softplus(sigma_linear) + 1e-6, packed
# ---------------------------------------------------------------------------
def _neg_binomial_kernel(h_ref, w_ref, b_ref, mu_ref, a_ref, *, mu_cols):
    # Single fused MXU matmul, f32 accumulation.
    z = jnp.dot(h_ref[...], w_ref[...], preferred_element_type=jnp.float32)
    z = z + b_ref[...].astype(jnp.float32)                     # (TBp, 2*pack*O)

    # Numerically stable softplus: max(x, 0) + log1p(exp(-|x|)).
    sp = jnp.maximum(z, 0.0) + jnp.log1p(jnp.exp(-jnp.abs(z)))

    # Split at a 128-lane (vreg) boundary: no relayout, unmasked stores.
    mu_ref[...] = sp[:, :mu_cols].astype(mu_ref.dtype)
    a_ref[...] = (sp[:, mu_cols:] + 1e-6).astype(a_ref.dtype)


def pick_pack(input_size, output_size):
    """Smallest row-packing factor making both pack*K and pack*O multiples of 128."""
    pk = 128 // math.gcd(128, input_size)
    po = 128 // math.gcd(128, output_size)
    return (pk * po) // math.gcd(pk, po)


def fuse_params(w_mu, b_mu, w_sigma, b_sigma, pack):
    """One-time parameter fusion (lives at init time in a real model).

    Block-diagonal weight so `pack` logical rows are processed as one lane-dense
    packed row; columns [0, pack*O) are the mu heads, [pack*O, 2*pack*O) the alpha heads.
    """
    eye = jnp.eye(pack, dtype=w_mu.dtype)
    w_mu_bd = jnp.kron(eye, w_mu.T)        # (pack*K, pack*O)
    w_sg_bd = jnp.kron(eye, w_sigma.T)     # (pack*K, pack*O)
    w_fused = jnp.concatenate([w_mu_bd, w_sg_bd], axis=1)          # (pack*K, 2*pack*O)
    b_fused = jnp.concatenate([jnp.tile(b_mu, pack), jnp.tile(b_sigma, pack)])
    return w_fused, b_fused.reshape(1, -1)


def _pick_batch_tile(b_packed, row_bytes):
    """Packed-row batch tile: big enough to amortize the ~0.35us per-step pipeline
    overhead (~1 MiB of h per step), small enough to double-buffer under v5e's
    16 MiB scoped-VMEM default, and capped so the grid keeps >= 4 steps when the
    batch allows (so v7x's two TensorCores both get work)."""
    if b_packed <= 32:
        return b_packed                              # single full-array block
    tbp = max(8, (1 << 20) // row_bytes)             # ~1 MiB of h per step
    tbp = min(tbp, pl.cdiv(b_packed, 4), 2048)       # keep >= 4 grid steps
    tbp = max(8, (tbp // 8) * 8)                     # sublane-aligned
    return min(tbp, b_packed)


@partial(jax.jit, static_argnames=("output_size", "pack"))
def negative_binomial_forward(h, w_fused, b_fused, *, output_size, pack):
    """h: (B, K); fused params from fuse_params(). Returns (mu, alpha), each (B, O) f32."""
    B, K = h.shape
    O = output_size

    # Pad batch only to a multiple of `pack` (< pack rows; zero in the common case).
    Bp = pl.cdiv(B, pack) * pack
    if Bp != B:
        h = jnp.pad(h, ((0, Bp - B), (0, 0)))
    b_packed = Bp // pack
    h_packed = h.reshape(b_packed, pack * K)         # contiguous, free reshape

    tbp = _pick_batch_tile(b_packed, pack * K * h.dtype.itemsize)
    grid = (pl.cdiv(b_packed, tbp),)                 # ragged last block handled by Pallas

    mu_p, a_p = pl.pallas_call(
        partial(_neg_binomial_kernel, mu_cols=pack * O),
        out_shape=(
            jax.ShapeDtypeStruct((b_packed, pack * O), jnp.float32),
            jax.ShapeDtypeStruct((b_packed, pack * O), jnp.float32),
        ),
        grid=grid,
        in_specs=[
            pl.BlockSpec((tbp, pack * K), lambda i: (i, 0)),            # h: streamed
            pl.BlockSpec((pack * K, 2 * pack * O), lambda i: (0, 0)),   # weights: resident
            pl.BlockSpec((1, 2 * pack * O), lambda i: (0, 0)),          # bias: resident
        ],
        out_specs=(
            pl.BlockSpec((tbp, pack * O), lambda i: (i, 0)),
            pl.BlockSpec((tbp, pack * O), lambda i: (i, 0)),
        ),
        compiler_params=pltpu.CompilerParams(
            dimension_semantics=("parallel",)),      # batch tiles split across TCs on v7x
    )(h_packed, w_fused, b_fused)

    mu = mu_p.reshape(Bp, O)                         # free contiguous reshapes
    alpha = a_p.reshape(Bp, O)
    if Bp != B:                                      # only when B % pack != 0
        mu, alpha = mu[:B], alpha[:B]
    return mu, alpha


def _reference(h, w_mu, b_mu, w_sigma, b_sigma):
    mu_lin = h @ w_mu.T + b_mu
    sig_lin = h @ w_sigma.T + b_sigma
    mu = jnp.log(1.0 + jnp.exp(mu_lin))
    alpha = jnp.log(1.0 + jnp.exp(sig_lin)) + 1e-6
    return mu, alpha


if __name__ == "__main__":
    key = jax.random.PRNGKey(0)
    batch, input_size, output_size = 8, 32, 16

    k_h, k_wm, k_bm, k_ws, k_bs = jax.random.split(key, 5)
    bound = 1.0 / (input_size ** 0.5)  # mimic nn.Linear default init bounds
    h = jax.random.normal(k_h, (batch, input_size), dtype=jnp.float32)
    w_mu = jax.random.uniform(k_wm, (output_size, input_size),
                              minval=-bound, maxval=bound, dtype=jnp.float32)
    b_mu = jax.random.uniform(k_bm, (output_size,),
                              minval=-bound, maxval=bound, dtype=jnp.float32)
    w_sigma = jax.random.uniform(k_ws, (output_size, input_size),
                                 minval=-bound, maxval=bound, dtype=jnp.float32)
    b_sigma = jax.random.uniform(k_bs, (output_size,),
                                 minval=-bound, maxval=bound, dtype=jnp.float32)

    pack = pick_pack(input_size, output_size)        # -> 8 for (K=32, O=16)
    w_fused, b_fused = fuse_params(w_mu, b_mu, w_sigma, b_sigma, pack)

    mu, alpha = negative_binomial_forward(h, w_fused, b_fused,
                                          output_size=output_size, pack=pack)
    jax.block_until_ready((mu, alpha))

    mu_ref, alpha_ref = _reference(h, w_mu, b_mu, w_sigma, b_sigma)
    assert mu.shape == (batch, output_size) and alpha.shape == (batch, output_size)
    assert jnp.allclose(mu, mu_ref, atol=1e-5, rtol=1e-5)
    assert jnp.allclose(alpha, alpha_ref, atol=1e-5, rtol=1e-5)

    # Larger, non-divisible batch: exercises the tiny pack-alignment pad and the
    # ragged last grid block (clamped reads, dropped OOB writes).
    B2 = 1030
    h2 = jax.random.normal(jax.random.PRNGKey(1), (B2, input_size), dtype=jnp.float32)
    mu2, alpha2 = negative_binomial_forward(h2, w_fused, b_fused,
                                            output_size=output_size, pack=pack)
    jax.block_until_ready((mu2, alpha2))
    mu2_ref, alpha2_ref = _reference(h2, w_mu, b_mu, w_sigma, b_sigma)
    assert jnp.allclose(mu2, mu2_ref, atol=1e-5, rtol=1e-5)
    assert jnp.allclose(alpha2, alpha2_ref, atol=1e-5, rtol=1e-5)

    print("KERNEL_OK")
</pallas_src>

<mosaic_0001>
module attributes {stable_mosaic.version = 11 : i64} {
  func.func @_neg_binomial_kernel(%arg0: i32, %arg1: memref<1x256xf32, #tpu.memory_space<vmem>>, %arg2: memref<256x256xf32, #tpu.memory_space<vmem>>, %arg3: memref<1x256xf32, #tpu.memory_space<vmem>>, %arg4: memref<1x128xf32, #tpu.memory_space<vmem>>, %arg5: memref<1x128xf32, #tpu.memory_space<vmem>>) attributes {dimension_semantics = [#tpu.dimension_semantics<parallel>], iteration_bounds = array<i64: 1>, scalar_prefetch = 0 : i64, scratch_operands = 0 : i64, tpu.core_type = #tpu.core_type<tc>, window_params = [{transform_indices = @transform_0, window_bounds = array<i64: 1, 256>}, {pipeline_mode = #tpu.pipeline_mode<synchronous>, transform_indices = @transform_1, window_bounds = array<i64: 256, 256>}, {pipeline_mode = #tpu.pipeline_mode<synchronous>, transform_indices = @transform_2, window_bounds = array<i64: 1, 256>}, {transform_indices = @transform_3, window_bounds = array<i64: 1, 128>}, {transform_indices = @transform_4, window_bounds = array<i64: 1, 128>}]} {
    %c0 = arith.constant 0 : index
    %c0_0 = arith.constant 0 : index
    %0 = vector.load %arg1[%c0, %c0_0] : memref<1x256xf32, #tpu.memory_space<vmem>>, vector<1x256xf32>
    %c0_1 = arith.constant 0 : index
    %c0_2 = arith.constant 0 : index
    %1 = vector.load %arg2[%c0_1, %c0_2] : memref<256x256xf32, #tpu.memory_space<vmem>>, vector<256x256xf32>
    %cst = arith.constant dense<0.000000e+00> : vector<1x256xf32>
    %2 = tpu.matmul %0, %1, %cst {dimension_numbers = #tpu.dot_dimension_numbers<[1], [0], [0], [1], [0, 0, 1, 1], [], []>} : vector<1x256xf32>, vector<256x256xf32>, vector<1x256xf32> -> vector<1x256xf32>
    %c0_3 = arith.constant 0 : index
    %c0_4 = arith.constant 0 : index
    %3 = vector.load %arg3[%c0_3, %c0_4] : memref<1x256xf32, #tpu.memory_space<vmem>>, vector<1x256xf32>
    %4 = arith.addf %2, %3 : vector<1x256xf32>
    %cst_5 = arith.constant 0.000000e+00 : f32
    %5 = vector.broadcast %cst_5 : f32 to vector<1x256xf32>
    %6 = arith.maximumf %4, %5 : vector<1x256xf32>
    %7 = math.absf %4 : vector<1x256xf32>
    %cst_6 = arith.constant 0.000000e+00 : f32
    %8 = vector.broadcast %cst_6 : f32 to vector<1x256xf32>
    %9 = arith.subf %8, %7 : vector<1x256xf32>
    %10 = math.exp %9 : vector<1x256xf32>
    %11 = math.log1p %10 : vector<1x256xf32>
    %12 = arith.addf %6, %11 : vector<1x256xf32>
    %13 = vector.extract_strided_slice %12 {offsets = [0, 0], sizes = [1, 128], strides = [1, 1]} : vector<1x256xf32> to vector<1x128xf32>
    %c0_7 = arith.constant 0 : index
    %c0_8 = arith.constant 0 : index
    %14 = vector.load %arg4[%c0_7, %c0_8] : memref<1x128xf32, #tpu.memory_space<vmem>>, vector<1x128xf32>
    tpu.vector_store %arg4[%c0_7, %c0_8], %13 {strides = array<i32>} : memref<1x128xf32, #tpu.memory_space<vmem>>, vector<1x128xf32>,
    %15 = vector.extract_strided_slice %12 {offsets = [0, 128], sizes = [1, 128], strides = [1, 1]} : vector<1x256xf32> to vector<1x128xf32>
    %cst_9 = arith.constant 9.99999997E-7 : f32
    %16 = vector.broadcast %cst_9 : f32 to vector<1x128xf32>
    %17 = arith.addf %15, %16 : vector<1x128xf32>
    %c0_10 = arith.constant 0 : index
    %c0_11 = arith.constant 0 : index
    %18 = vector.load %arg5[%c0_10, %c0_11] : memref<1x128xf32, #tpu.memory_space<vmem>>, vector<1x128xf32>
    tpu.vector_store %arg5[%c0_10, %c0_11], %17 {strides = array<i32>} : memref<1x128xf32, #tpu.memory_space<vmem>>, vector<1x128xf32>,
    return
  }
  func.func @transform_0(%arg0: i32) -> (i32, i32) {
    %c0_i32 = arith.constant 0 : i32
    %c0_i32_0 = arith.constant 0 : i32
    return %arg0, %c0_i32 : i32, i32
  }
  func.func @transform_1(%arg0: i32) -> (i32, i32) {
    %c0_i32 = arith.constant 0 : i32
    %c0_i32_0 = arith.constant 0 : i32
    %c0_i32_1 = arith.constant 0 : i32
    return %c0_i32, %c0_i32_0 : i32, i32
  }
  func.func @transform_2(%arg0: i32) -> (i32, i32) {
    %c0_i32 = arith.constant 0 : i32
    %c0_i32_0 = arith.constant 0 : i32
    %c0_i32_1 = arith.constant 0 : i32
    return %c0_i32, %c0_i32_0 : i32, i32
  }
  func.func @transform_3(%arg0: i32) -> (i32, i32) {
    %c0_i32 = arith.constant 0 : i32
    %c0_i32_0 = arith.constant 0 : i32
    return %arg0, %c0_i32 : i32, i32
  }
  func.func @transform_4(%arg0: i32) -> (i32, i32) {
    %c0_i32 = arith.constant 0 : i32
    %c0_i32_0 = arith.constant 0 : i32
    return %arg0, %c0_i32 : i32, i32
  }
}

</mosaic_0001>

<llo_original>
// kernel: negative_binomial_forward.1
$region0: #{negative_binomial_forward.1}
  #allocation0 [shape = 'u32[]', space=smem, size = 0x4, offset = 0x4, fixed_abs, tag = 'smem constant byte address 0x4 - core index']
  #allocation1 [shape = 'u32[144,128]{1,0:T(1,128)}', space=vmem, size = 0x12000, scoped, tag = 'internal scratch']
  %s0 = inlined_call_operand.vmem [shape: f32[1,256], index: 0, kind: input, shape index: {}]
  %s1 = inlined_call_operand.hbm [shape: f32[256,256], index: 1, kind: input, shape index: {}]
  %s2 = inlined_call_operand.vmem [shape: f32[1,256], index: 2, kind: input, shape index: {}]
  %s3 = inlined_call_operand.vmem [shape: f32[1,128], index: 3, kind: output, shape index: {0}]
  %s4 = inlined_call_operand.vmem [shape: f32[1,128], index: 4, kind: output, shape index: {1}]
  %5 = xla_tuple %s3, %s4
  %s6 = sld [smem:[#allocation0]]
  $region34: #{negative_binomial_forward.1} parent=0
    _
  %s8 = ssub.s32 1, %s6
  %s9 = scalar_select 0, %s8, %s6
  $region1: #{negative_binomial_forward.1} parent=0
    #allocation2 [shape = 'u8[262144]{0}', space=vmem, size = 0x40000, scoped, tag = 'input window, operand 1, single buffered']
    #allocation3 [shape = 's32[1]{0}', space=sflag, size = 0x4, scoped, tag = 'scoped memory for negative_binomial_forward.1']
    %10 = vsyncpa [#allocation3], 0
    // Predicated region
    $region2: #{negative_binomial_forward.1} parent=1 // pred_check
      _
    $region3: #{negative_binomial_forward.1} parent=1 // pred_check_branch
      %12 = sbr.rel (0) target = $region5
    $region4: #{negative_binomial_forward.1} parent=1 // pred_region
      _
    $region5: #{negative_binomial_forward.1} parent=1 // pred_fallthru
      _
    // Predicated region
    $region6: #{negative_binomial_forward.1} parent=1 // pred_check
      _
    $region7: #{negative_binomial_forward.1} parent=1 // pred_check_branch
      %14 = sbr.rel (0) target = $region9
    $region8: #{negative_binomial_forward.1} parent=1 // pred_region
      %s16 = ssub.s32 8192, 8192
      %17 = vsyncadd [#allocation3], %s16
      %s18 = sshll.u32 [#allocation2], 4
      %s19 = int_to_ptr.vmem [resolvable:$true] %s18
      %24 = dma.hbm_to_vmem [thread:$0]  %s1, 8192, %s19, [#allocation3], 256, 256, 16
    $region9: #{negative_binomial_forward.1} parent=1 // pred_fallthru
      _
    // Predicated region
    $region10: #{negative_binomial_forward.1} parent=1 // pred_check
      _
    $region11: #{negative_binomial_forward.1} parent=1 // pred_check_branch
      %26 = sbr.rel (0) target = $region13
    $region12: #{negative_binomial_forward.1} parent=1 // pred_region
      _
    $region13: #{negative_binomial_forward.1} parent=1 // pred_fallthru
      _
    // Predicated region
    $region14: #{negative_binomial_forward.1} parent=1 // pred_check
      _
    $region15: #{negative_binomial_forward.1} parent=1 // pred_check_branch
      %28 = sbr.rel (0) target = $region17
    $region16: #{negative_binomial_forward.1} parent=1 // pred_region
      %29 = dma.done [#allocation3], 8192
    $region17: #{negative_binomial_forward.1} parent=1 // pred_fallthru
      _
    %v30 = vld [vmem:[%s0] sm:$0x3]
    %v31 = vld [vmem:[#allocation2] sm:$0xff]
    %v32 = vld [vmem:[#allocation2 + $0x8] sm:$0xff]
    %v33 = vld [vmem:[#allocation2 + $0x10] sm:$0xff]
    %v34 = vld [vmem:[#allocation2 + $0x18] sm:$0xff]
    %v35 = vld [vmem:[#allocation2 + $0x20] sm:$0xff]
    %v36 = vld [vmem:[#allocation2 + $0x28] sm:$0xff]
    %v37 = vld [vmem:[#allocation2 + $0x30] sm:$0xff]
    %v38 = vld [vmem:[#allocation2 + $0x38] sm:$0xff]
    %v39 = vld [vmem:[#allocation2 + $0x40] sm:$0xff]
    %v40 = vld [vmem:[#allocation2 + $0x48] sm:$0xff]
    %v41 = vld [vmem:[#allocation2 + $0x50] sm:$0xff]
    %v42 = vld [vmem:[#allocation2 + $0x58] sm:$0xff]
    %v43 = vld [vmem:[#allocation2 + $0x60] sm:$0xff]
    %v44 = vld [vmem:[#allocation2 + $0x68] sm:$0xff]
    %v45 = vld [vmem:[#allocation2 + $0x70] sm:$0xff]
    %v46 = vld [vmem:[#allocation2 + $0x78] sm:$0xff]
    %v47 = vld [vmem:[#allocation2 + $0x80] sm:$0xff]
    %v48 = vld [vmem:[#allocation2 + $0x88] sm:$0xff]
    %v49 = vld [vmem:[#allocation2 + $0x90] sm:$0xff]
    %v50 = vld [vmem:[#allocation2 + $0x98] sm:$0xff]
    %v51 = vld [vmem:[#allocation2 + $0xa0] sm:$0xff]
    %v52 = vld [vmem:[#allocation2 + $0xa8] sm:$0xff]
    %v53 = vld [vmem:[#allocation2 + $0xb0] sm:$0xff]
    %v54 = vld [vmem:[#allocation2 + $0xb8] sm:$0xff]
    %v55 = vld [vmem:[#allocation2 + $0xc0] sm:$0xff]
    %v56 = vld [vmem:[#allocation2 + $0xc8] sm:$0xff]
    %v57 = vld [vmem:[#allocation2 + $0xd0] sm:$0xff]
    %v58 = vld [vmem:[#allocation2 + $0xd8] sm:$0xff]
    %v59 = vld [vmem:[#allocation2 + $0xe0] sm:$0xff]
    %v60 = vld [vmem:[#allocation2 + $0xe8] sm:$0xff]
    %v61 = vld [vmem:[#allocation2 + $0xf0] sm:$0xff]
    %v62 = vld [vmem:[#allocation2 + $0xf8] sm:$0xff]
    %v63 = vld [vmem:[#allocation2 + $0x100] sm:$0xff]
    %v64 = vld [vmem:[#allocation2 + $0x108] sm:$0xff]
    %v65 = vld [vmem:[#allocation2 + $0x110] sm:$0xff]
    %v66 = vld [vmem:[#allocation2 + $0x118] sm:$0xff]
    %v67 = vld [vmem:[#allocation2 + $0x120] sm:$0xff]
    %v68 = vld [vmem:[#allocation2 + $0x128] sm:$0xff]
    %v69 = vld [vmem:[#allocation2 + $0x130] sm:$0xff]
    %v70 = vld [vmem:[#allocation2 + $0x138] sm:$0xff]
    %v71 = vld [vmem:[#allocation2 + $0x140] sm:$0xff]
    %v72 = vld [vmem:[#allocation2 + $0x148] sm:$0xff]
    %v73 = vld [vmem:[#allocation2 + $0x150] sm:$0xff]
    %v74 = vld [vmem:[#allocation2 + $0x158] sm:$0xff]
    %v75 = vld [vmem:[#allocation2 + $0x160] sm:$0xff]
    %v76 = vld [vmem:[#allocation2 + $0x168] sm:$0xff]
    %v77 = vld [vmem:[#allocation2 + $0x170] sm:$0xff]
    %v78 = vld [vmem:[#allocation2 + $0x178] sm:$0xff]
    %v79 = vld [vmem:[#allocation2 + $0x180] sm:$0xff]
    %v80 = vld [vmem:[#allocation2 + $0x188] sm:$0xff]
    %v81 = vld [vmem:[#allocation2 + $0x190] sm:$0xff]
    %v82 = vld [vmem:[#allocation2 + $0x198] sm:$0xff]
    %v83 = vld [vmem:[#allocation2 + $0x1a0] sm:$0xff]
    %v84 = vld [vmem:[#allocation2 + $0x1a8] sm:$0xff]
    %v85 = vld [vmem:[#allocation2 + $0x1b0] sm:$0xff]
    %v86 = vld [vmem:[#allocation2 + $0x1b8] sm:$0xff]
    %v87 = vld [vmem:[#allocation2 + $0x1c0] sm:$0xff]
    %v88 = vld [vmem:[#allocation2 + $0x1c8] sm:$0xff]
    %v89 = vld [vmem:[#allocation2 + $0x1d0] sm:$0xff]
    %v90 = vld [vmem:[#allocation2 + $0x1d8] sm:$0xff]
    %v91 = vld [vmem:[#allocation2 + $0x1e0] sm:$0xff]
    %v92 = vld [vmem:[#allocation2 + $0x1e8] sm:$0xff]
    %v93 = vld [vmem:[#allocation2 + $0x1f0] sm:$0xff]
    %v94 = vld [vmem:[#allocation2 + $0x1f8] sm:$0xff]
    %v95 = vld [vmem:[%s2] sm:$0x3]
    %v97 = vlaneseq
    %v98 = vshrl.u32 %v97, 7
    %v99 = vsub.s32 0, %v98
    %v100 = vrot.slane %v30, %v99
    %v101 = vlaneseq
    %v102 = vshrl.u32 %v101, 7
    %v103 = vsub.s32 1, %v102
    %v104 = vrot.slane %v30, %v103
    %v108 = vlaneseq
    %v109 = vshrl.u32 %v108, 7
    %v110 = vsub.s32 0, %v109
    %v111 = vrot.slane %v95, %v110
    %v112 = vlaneseq
    %v113 = vshrl.u32 %v112, 7
    %v114 = vsub.s32 1, %v113
    %v115 = vrot.slane %v95, %v114
    %118 = vmatprep.subr.mxu0 %v32
    %119 = vmatpush1.msra.mxu0 %v31
    %120 = vmatprep.subr.mxu0 %v34
    %121 = vmatpush1.msra.mxu0 %v33
    %122 = vmatprep.subr.mxu0 %v36
    %123 = vmatpush1.msra.mxu0 %v35
    %124 = vmatprep.subr.mxu0 %v38
    %125 = vmatpush1.msra.mxu0 %v37
    %126 = vmatprep.subr.mxu0 %v40
    %127 = vmatpush1.msra.mxu0 %v39
    %128 = vmatprep.subr.mxu0 %v42
    %129 = vmatpush1.msra.mxu0 %v41
    %130 = vmatprep.subr.mxu0 %v44
    %131 = vmatpush1.msra.mxu0 %v43
    %132 = vmatprep.subr.mxu0 %v46
    %133 = vmatpush1.msra.mxu0 %v45
    %134 = vmatprep.subr.mxu0 %v48
    %135 = vmatpush1.msra.mxu0 %v47
    %136 = vmatprep.subr.mxu0 %v50
    %137 = vmatpush1.msra.mxu0 %v49
    %138 = vmatprep.subr.mxu0 %v52
    %139 = vmatpush1.msra.mxu0 %v51
    %140 = vmatprep.subr.mxu0 %v54
    %141 = vmatpush1.msra.mxu0 %v53
    %142 = vmatprep.subr.mxu0 %v56
    %143 = vmatpush1.msra.mxu0 %v55
    %144 = vmatprep.subr.mxu0 %v58
    %145 = vmatpush1.msra.mxu0 %v57
    %146 = vmatprep.subr.mxu0 %v60
    %147 = vmatpush1.msra.mxu0 %v59
    %148 = vmatprep.subr.mxu0 %v62
    %149 = vmatpush1.msra.mxu0 %v61
    %150 = vmatprep.subr.mxu0 %v64
    %151 = vmatpush1.msra.mxu0 %v63
    %152 = vmatprep.subr.mxu0 %v66
    %153 = vmatpush1.msra.mxu0 %v65
    %154 = vmatprep.subr.mxu0 %v68
    %155 = vmatpush1.msra.mxu0 %v67
    %156 = vmatprep.subr.mxu0 %v70
    %157 = vmatpush1.msra.mxu0 %v69
    %158 = vmatprep.subr.mxu0 %v72
    %159 = vmatpush1.msra.mxu0 %v71
    %160 = vmatprep.subr.mxu0 %v74
    %161 = vmatpush1.msra.mxu0 %v73
    %162 = vmatprep.subr.mxu0 %v76
    %163 = vmatpush1.msra.mxu0 %v75
    %164 = vmatprep.subr.mxu0 %v78
    %165 = vmatpush1.msra.mxu0 %v77
    %166 = vmatprep.subr.mxu0 %v80
    %167 = vmatpush1.msra.mxu0 %v79
    %168 = vmatprep.subr.mxu0 %v82
    %169 = vmatpush1.msra.mxu0 %v81
    %170 = vmatprep.subr.mxu0 %v84
    %171 = vmatpush1.msra.mxu0 %v83
    %172 = vmatprep.subr.mxu0 %v86
    %173 = vmatpush1.msra.mxu0 %v85
    %174 = vmatprep.subr.mxu0 %v88
    %175 = vmatpush1.msra.mxu0 %v87
    %176 = vmatprep.subr.mxu0 %v90
    %177 = vmatpush1.msra.mxu0 %v89
    %178 = vmatprep.subr.mxu0 %v92
    %179 = vmatpush1.msra.mxu0 %v91
    %180 = vmatprep.subr.mxu0 %v94
    %181 = vmatpush1.msra.mxu0 %v93
    %182 = vmatprep.mubr.f32.mxu0 %v104
    %183 = vmatmul.mubr.f32.gmra.mrb[0].mxu0 %v100
    %v184 = vpop.f32.mrb[0].mxu0
    %v185 = vadd.f32 %v111, %v184
    %v186 = vpop.f32.mrb[0].mxu0
    %v187 = vadd.f32 %v115, %v186
    %188 = vdwg.mxu0
    %v189 = vmax.f32 %v185, 0.0
    %v190 = vmax.f32 %v187, 0.0
    %v191 = vand.u32 2147483647, %v185
    %v192 = vand.u32 2147483647, %v187
    %v193 = vsub.f32 0.0, %v191
    %v194 = vsub.f32 0.0, %v192
    %v195 = vmul.f32 %v193, 1.442695
    %v196 = vpow.pop %v195
    %v197 = vmul.f32 %v194, 1.442695
    %v198 = vpow.pop %v197
    %v199 = vadd.f32 %v196, 1.0
    %v200 = vlog2.pop %v199
    %v201 = vmul.f32 %v200, 0.6931472
    %v202 = vmul.f32 -0.5, %v196
    %v203 = vadd.f32 %v202, 1.0
    %v204 = vmul.f32 %v203, %v196
    %v205 = vand.u32 2147483647, %v196
    %vm206 = vcmp.lt.f32.partialorder %v205, 0.0004427343
    %v207 = vsel %vm206, %v204, %v201
    %v208 = vadd.f32 %v198, 1.0
    %v209 = vlog2.pop %v208
    %v210 = vmul.f32 %v209, 0.6931472
    %v211 = vmul.f32 -0.5, %v198
    %v212 = vadd.f32 %v211, 1.0
    %v213 = vmul.f32 %v212, %v198
    %v214 = vand.u32 2147483647, %v198
    %vm215 = vcmp.lt.f32.partialorder %v214, 0.0004427343
    %v216 = vsel %vm215, %v213, %v210
    %v217 = vadd.f32 %v189, %v207
    %v218 = vadd.f32 %v190, %v216
    %219 = vst [vmem:[%s3] sm:$0x1] %v217
    %v220 = vadd.f32 %v218, 1e-06
    %221 = vst [vmem:[%s4] sm:$0x1] %v220
    // Predicated region
    $region18: #{negative_binomial_forward.1} parent=1 // pred_check
      _
    $region19: #{negative_binomial_forward.1} parent=1 // pred_check_branch
      %223 = sbr.rel (0) target = $region21
    $region20: #{negative_binomial_forward.1} parent=1 // pred_region
      _
    $region21: #{negative_binomial_forward.1} parent=1 // pred_fallthru
      _
    // Predicated region
    $region22: #{negative_binomial_forward.1} parent=1 // pred_check
      _
    $region23: #{negative_binomial_forward.1} parent=1 // pred_check_branch
      %225 = sbr.rel (0) target = $region25
    $region24: #{negative_binomial_forward.1} parent=1 // pred_region
      _
    $region25: #{negative_binomial_forward.1} parent=1 // pred_fallthru
      _
    // Predicated region
    $region26: #{negative_binomial_forward.1} parent=1 // pred_check
      _
    $region27: #{negative_binomial_forward.1} parent=1 // pred_check_branch
      %227 = sbr.rel (0) target = $region29
    $region28: #{negative_binomial_forward.1} parent=1 // pred_region
      _
    $region29: #{negative_binomial_forward.1} parent=1 // pred_fallthru
      _
    // Predicated region
    $region30: #{negative_binomial_forward.1} parent=1 // pred_check
      _
    $region31: #{negative_binomial_forward.1} parent=1 // pred_check_branch
      %229 = sbr.rel (0) target = $region33
    $region32: #{negative_binomial_forward.1} parent=1 // pred_region
      _
    $region33: #{negative_binomial_forward.1} parent=1 // pred_fallthru
      _
    %230 = vsyncpa [#allocation3], 1

</llo_original>
